<compile_context>
chip_gen: v7x
topology: tpu7x:2x2x1
jax: 0.10.0
libtpu: 0.0.40
codegen_flags: <defaults>
</compile_context>

<pallas_src>
import functools

import jax
import jax.numpy as jnp
from jax.experimental import pallas as pl
from jax.experimental.pallas import tpu as pltpu


def _pick_hw_tile(hw, cap=32 * 1024):
    """Largest HW tile that divides hw, is a multiple of 128, and fits the cap."""
    if hw <= cap:
        return hw
    t = (cap // 128) * 128
    while t >= 128:
        if hw % t == 0:
            return t
        t -= 128
    # TODO(synk): mask a ragged HW tail instead of falling back to one block.
    return hw


def _fused_kernel(x_ref, w1t_ref, b1_ref, w2_ref, b2_ref, o_ref, acc_ref, *,
                  hw_total):
    """One grid step = one (C_in, THW) slab of one batch element.

    x_ref   : (1, C_in, THW)   input slab (bf16 in HBM, cast to f32 here)
    w1t_ref : (C_feat, C_in)   1x1-conv weight, transposed
    b1_ref  : (C_feat, 1)      conv bias (column)
    w2_ref  : (C_feat, N_cls)  head weight
    b2_ref  : (1, N_cls)       head bias (row)
    o_ref   : (1, 1, N_cls)    per-batch output block
    acc_ref : (C_feat, THW)    f32 running sum of ReLU'd features (VMEM scratch)
    """
    t = pl.program_id(1)
    c_feat, c_in = w1t_ref.shape

    @pl.when(t == 0)
    def _init():
        acc_ref[...] = jnp.zeros_like(acc_ref)

    x_blk = x_ref[0].astype(jnp.float32)          # (C_in, THW), f32 math only
    w1t = w1t_ref[...]                            # (C_feat, C_in)

    # 1x1 conv as C_in unrolled VPU broadcast-MACs (MXU would be <1% utilized
    # at K=4); result is lane-dense (C_feat, THW).
    z = w1t[:, 0:1] * x_blk[0:1, :]
    for c in range(1, c_in):                      # static unroll, c_in == 4
        z = z + w1t[:, c:c + 1] * x_blk[c:c + 1, :]
    z = jnp.maximum(z + b1_ref[...], 0.0)         # bias + ReLU (fused, f32)

    acc_ref[...] += z                             # pure VPU accumulate

    @pl.when(t == pl.num_programs(1) - 1)
    def _finish():
        # Global average pool: a single lane-reduce per batch element.
        pooled = jnp.sum(acc_ref[...], axis=1, keepdims=True) * (1.0 / hw_total)
        # Head (C_feat -> N_cls) without any transpose:
        head = jnp.sum(w2_ref[...] * pooled, axis=0, keepdims=True) + b2_ref[...]
        o_ref[...] = head.reshape(o_ref.shape).astype(o_ref.dtype)


def base_wrapper_forward(x_nchw, params, *, hw_tile_cap=32 * 1024):
    """BaseWrapper equivalent: frontend(backbone(x)), fused in one kernel."""
    w1, b1, w2, b2 = params
    n, c_in, h, w = x_nchw.shape
    hw = h * w
    c_feat = w1.shape[1]
    n_cls = w2.shape[1]
    thw = _pick_hw_tile(hw, hw_tile_cap)

    # Free reshape of the NCHW buffer (no transpose pass over HBM).  Narrow
    # only the HBM-side dtype of the dominant tensor; in a real pipeline this
    # bf16 cast fuses into whatever produced x.
    x_slab = x_nchw.reshape(n, c_in, hw).astype(jnp.bfloat16)

    w1t = jnp.asarray(w1, jnp.float32).T                       # (C_feat, C_in)
    b1c = jnp.asarray(b1, jnp.float32).reshape(c_feat, 1)      # (C_feat, 1)
    w2f = jnp.asarray(w2, jnp.float32).reshape(c_feat, n_cls)  # (C_feat, N_cls)
    b2r = jnp.asarray(b2, jnp.float32).reshape(1, n_cls)       # (1, N_cls)

    kernel = functools.partial(_fused_kernel, hw_total=float(hw))

    out = pl.pallas_call(
        kernel,
        out_shape=jax.ShapeDtypeStruct((n, 1, n_cls), jnp.float32),
        grid=(n, hw // thw),
        in_specs=[
            pl.BlockSpec((1, c_in, thw), lambda i, t: (i, 0, t)),
            pl.BlockSpec((c_feat, c_in), lambda i, t: (0, 0)),
            pl.BlockSpec((c_feat, 1), lambda i, t: (0, 0)),
            pl.BlockSpec((c_feat, n_cls), lambda i, t: (0, 0)),
            pl.BlockSpec((1, n_cls), lambda i, t: (0, 0)),
        ],
        out_specs=pl.BlockSpec((1, 1, n_cls), lambda i, t: (i, 0, 0)),
        scratch_shapes=[pltpu.VMEM((c_feat, thw), jnp.float32)],
        compiler_params=pltpu.CompilerParams(
            dimension_semantics=("parallel", "arbitrary")),
    )(x_slab, w1t, b1c, w2f, b2r)

    return out.reshape(n, n_cls)


def reference_forward(x_nchw, params):
    w1, b1, w2, b2 = params
    n, c_in, h, w = x_nchw.shape
    x_rows = jnp.transpose(x_nchw, (0, 2, 3, 1)).reshape(n, h * w, c_in)
    feats = jnp.maximum(
        jnp.einsum("nsc,cf->nsf", x_rows, w1) + b1.reshape(1, 1, -1), 0.0)
    pooled = feats.mean(axis=1)
    return pooled @ w2 + b2.reshape(1, -1)


if __name__ == "__main__":
    N, C_IN, H, W = 2, 4, 16, 16
    C_FEAT, N_CLS = 32, 8

    key = jax.random.PRNGKey(0)
    kx, k1, k2 = jax.random.split(key, 3)

    x = jax.random.normal(kx, (N, C_IN, H, W), dtype=jnp.float32)

    # Deterministic synthetic parameters (no checkpoint loading).
    w1 = jax.random.normal(k1, (C_IN, C_FEAT), dtype=jnp.float32) * 0.1
    b1 = jnp.linspace(-0.1, 0.1, C_FEAT, dtype=jnp.float32).reshape(1, C_FEAT)
    w2 = jax.random.normal(k2, (C_FEAT, N_CLS), dtype=jnp.float32) * 0.1
    b2 = jnp.linspace(0.0, 0.05, N_CLS, dtype=jnp.float32).reshape(1, N_CLS)
    params = (w1, b1, w2, b2)

    out = jax.block_until_ready(base_wrapper_forward(x, params))
    ref = jax.block_until_ready(reference_forward(x, params))

    assert out.shape == (N, N_CLS), out.shape
    # Tolerance loosened because the kernel reads x as bf16 (HBM-side only).
    assert jnp.allclose(out, ref, atol=2e-2, rtol=2e-2), "mismatch vs reference"
    print("KERNEL_OK")
</pallas_src>

<mosaic_0001>
module attributes {stable_mosaic.version = 11 : i64} {
  func.func @_fused_kernel(%arg0: i32, %arg1: i32, %arg2: memref<1x4x256xbf16, #tpu.memory_space<vmem>>, %arg3: memref<32x4xf32, #tpu.memory_space<vmem>>, %arg4: memref<32x1xf32, #tpu.memory_space<vmem>>, %arg5: memref<32x8xf32, #tpu.memory_space<vmem>>, %arg6: memref<1x8xf32, #tpu.memory_space<vmem>>, %arg7: memref<1x1x8xf32, #tpu.memory_space<vmem>>, %arg8: memref<32x256xf32, #tpu.memory_space<vmem>>) attributes {dimension_semantics = [#tpu.dimension_semantics<parallel>, #tpu.dimension_semantics<arbitrary>], iteration_bounds = array<i64: 2, 1>, scalar_prefetch = 0 : i64, scratch_operands = 1 : i64, tpu.core_type = #tpu.core_type<tc>, window_params = [{transform_indices = @transform_0, window_bounds = array<i64: 1, 4, 256>}, {pipeline_mode = #tpu.pipeline_mode<synchronous>, transform_indices = @transform_1, window_bounds = array<i64: 32, 4>}, {pipeline_mode = #tpu.pipeline_mode<synchronous>, transform_indices = @transform_2, window_bounds = array<i64: 32, 1>}, {pipeline_mode = #tpu.pipeline_mode<synchronous>, transform_indices = @transform_3, window_bounds = array<i64: 32, 8>}, {pipeline_mode = #tpu.pipeline_mode<synchronous>, transform_indices = @transform_4, window_bounds = array<i64: 1, 8>}, {transform_indices = @transform_5, window_bounds = array<i64: 1, 1, 8>}]} {
    %c0_i32 = arith.constant 0 : i32
    %0 = arith.cmpi eq, %arg1, %c0_i32 : i32
    %1 = arith.extui %0 : i1 to i32
    %c0_i32_0 = arith.constant 0 : i32
    %2 = arith.cmpi ne, %1, %c0_i32_0 : i32
    scf.if %2 {
      %cst_13 = arith.constant 0.000000e+00 : f32
      %41 = vector.broadcast %cst_13 : f32 to vector<32x256xf32>
      %c0_14 = arith.constant 0 : index
      %c0_15 = arith.constant 0 : index
      %42 = vector.load %arg8[%c0_14, %c0_15] : memref<32x256xf32, #tpu.memory_space<vmem>>, vector<32x256xf32>
      tpu.vector_store %arg8[%c0_14, %c0_15], %41 {strides = array<i32>} : memref<32x256xf32, #tpu.memory_space<vmem>>, vector<32x256xf32>,
    } else {
    }
    %c0 = arith.constant 0 : index
    %c0_1 = arith.constant 0 : index
    %c0_2 = arith.constant 0 : index
    %3 = vector.load %arg2[%c0, %c0_1, %c0_2] : memref<1x4x256xbf16, #tpu.memory_space<vmem>>, vector<1x4x256xbf16>
    %4 = vector.shape_cast %3 : vector<1x4x256xbf16> to vector<4x256xbf16>
    %5 = arith.extf %4 : vector<4x256xbf16> to vector<4x256xf32>
    %c0_3 = arith.constant 0 : index
    %c0_4 = arith.constant 0 : index
    %6 = vector.load %arg3[%c0_3, %c0_4] : memref<32x4xf32, #tpu.memory_space<vmem>>, vector<32x4xf32>
    %7 = vector.extract_strided_slice %6 {offsets = [0, 0], sizes = [32, 1], strides = [1, 1]} : vector<32x4xf32> to vector<32x1xf32>
    %8 = vector.extract_strided_slice %5 {offsets = [0, 0], sizes = [1, 256], strides = [1, 1]} : vector<4x256xf32> to vector<1x256xf32>
    %9 = vector.broadcast %7 : vector<32x1xf32> to vector<32x256xf32>
    %10 = vector.broadcast %8 : vector<1x256xf32> to vector<32x256xf32>
    %11 = arith.mulf %9, %10 : vector<32x256xf32>
    %12 = vector.extract_strided_slice %6 {offsets = [0, 1], sizes = [32, 1], strides = [1, 1]} : vector<32x4xf32> to vector<32x1xf32>
    %13 = vector.extract_strided_slice %5 {offsets = [1, 0], sizes = [1, 256], strides = [1, 1]} : vector<4x256xf32> to vector<1x256xf32>
    %14 = vector.broadcast %12 : vector<32x1xf32> to vector<32x256xf32>
    %15 = vector.broadcast %13 : vector<1x256xf32> to vector<32x256xf32>
    %16 = arith.mulf %14, %15 : vector<32x256xf32>
    %17 = arith.addf %11, %16 : vector<32x256xf32>
    %18 = vector.extract_strided_slice %6 {offsets = [0, 2], sizes = [32, 1], strides = [1, 1]} : vector<32x4xf32> to vector<32x1xf32>
    %19 = vector.extract_strided_slice %5 {offsets = [2, 0], sizes = [1, 256], strides = [1, 1]} : vector<4x256xf32> to vector<1x256xf32>
    %20 = vector.broadcast %18 : vector<32x1xf32> to vector<32x256xf32>
    %21 = vector.broadcast %19 : vector<1x256xf32> to vector<32x256xf32>
    %22 = arith.mulf %20, %21 : vector<32x256xf32>
    %23 = arith.addf %17, %22 : vector<32x256xf32>
    %24 = vector.extract_strided_slice %6 {offsets = [0, 3], sizes = [32, 1], strides = [1, 1]} : vector<32x4xf32> to vector<32x1xf32>
    %25 = vector.extract_strided_slice %5 {offsets = [3, 0], sizes = [1, 256], strides = [1, 1]} : vector<4x256xf32> to vector<1x256xf32>
    %26 = vector.broadcast %24 : vector<32x1xf32> to vector<32x256xf32>
    %27 = vector.broadcast %25 : vector<1x256xf32> to vector<32x256xf32>
    %28 = arith.mulf %26, %27 : vector<32x256xf32>
    %29 = arith.addf %23, %28 : vector<32x256xf32>
    %c0_5 = arith.constant 0 : index
    %c0_6 = arith.constant 0 : index
    %30 = vector.load %arg4[%c0_5, %c0_6] : memref<32x1xf32, #tpu.memory_space<vmem>>, vector<32x1xf32>
    %31 = vector.broadcast %30 : vector<32x1xf32> to vector<32x256xf32>
    %32 = arith.addf %29, %31 : vector<32x256xf32>
    %cst = arith.constant 0.000000e+00 : f32
    %33 = vector.broadcast %cst : f32 to vector<32x256xf32>
    %34 = arith.maximumf %32, %33 : vector<32x256xf32>
    %c0_7 = arith.constant 0 : index
    %c0_8 = arith.constant 0 : index
    %35 = vector.load %arg8[%c0_7, %c0_8] : memref<32x256xf32, #tpu.memory_space<vmem>>, vector<32x256xf32>
    %36 = arith.addf %35, %34 : vector<32x256xf32>
    %c0_9 = arith.constant 0 : index
    %c0_10 = arith.constant 0 : index
    %37 = vector.load %arg8[%c0_9, %c0_10] : memref<32x256xf32, #tpu.memory_space<vmem>>, vector<32x256xf32>
    tpu.vector_store %arg8[%c0_9, %c0_10], %36 {strides = array<i32>} : memref<32x256xf32, #tpu.memory_space<vmem>>, vector<32x256xf32>,
    %c0_i32_11 = arith.constant 0 : i32
    %38 = arith.cmpi eq, %arg1, %c0_i32_11 : i32
    %39 = arith.extui %38 : i1 to i32
    %c0_i32_12 = arith.constant 0 : i32
    %40 = arith.cmpi ne, %39, %c0_i32_12 : i32
    scf.if %40 {
      %c0_13 = arith.constant 0 : index
      %c0_14 = arith.constant 0 : index
      %41 = vector.load %arg8[%c0_13, %c0_14] : memref<32x256xf32, #tpu.memory_space<vmem>>, vector<32x256xf32>
      %cst_15 = arith.constant dense<0.000000e+00> : vector<32xf32>
      %42 = vector.multi_reduction <add>, %41, %cst_15 [1] : vector<32x256xf32> to vector<32xf32>
      %43 = vector.shape_cast %42 : vector<32xf32> to vector<32x1xf32>
      %cst_16 = arith.constant 3.906250e-03 : f32
      %44 = vector.broadcast %cst_16 : f32 to vector<32x1xf32>
      %45 = arith.mulf %43, %44 : vector<32x1xf32>
      %c0_17 = arith.constant 0 : index
      %c0_18 = arith.constant 0 : index
      %46 = vector.load %arg5[%c0_17, %c0_18] : memref<32x8xf32, #tpu.memory_space<vmem>>, vector<32x8xf32>
      %47 = vector.broadcast %45 : vector<32x1xf32> to vector<32x8xf32>
      %48 = arith.mulf %46, %47 : vector<32x8xf32>
      %cst_19 = arith.constant dense<0.000000e+00> : vector<8xf32>
      %49 = vector.multi_reduction <add>, %48, %cst_19 [0] : vector<32x8xf32> to vector<8xf32>
      %50 = vector.shape_cast %49 : vector<8xf32> to vector<1x8xf32>
      %c0_20 = arith.constant 0 : index
      %c0_21 = arith.constant 0 : index
      %51 = vector.load %arg6[%c0_20, %c0_21] : memref<1x8xf32, #tpu.memory_space<vmem>>, vector<1x8xf32>
      %52 = arith.addf %50, %51 : vector<1x8xf32>
      %53 = vector.shape_cast %52 : vector<1x8xf32> to vector<1x1x8xf32>
      %c0_22 = arith.constant 0 : index
      %c0_23 = arith.constant 0 : index
      %c0_24 = arith.constant 0 : index
      %54 = vector.load %arg7[%c0_22, %c0_23, %c0_24] : memref<1x1x8xf32, #tpu.memory_space<vmem>>, vector<1x1x8xf32>
      tpu.vector_store %arg7[%c0_22, %c0_23, %c0_24], %53 {strides = array<i32>} : memref<1x1x8xf32, #tpu.memory_space<vmem>>, vector<1x1x8xf32>,
    } else {
    }
    return
  }
  func.func @transform_0(%arg0: i32, %arg1: i32) -> (i32, i32, i32) {
    %c0_i32 = arith.constant 0 : i32
    %c0_i32_0 = arith.constant 0 : i32
    return %arg0, %c0_i32, %arg1 : i32, i32, i32
  }
  func.func @transform_1(%arg0: i32, %arg1: i32) -> (i32, i32) {
    %c0_i32 = arith.constant 0 : i32
    %c0_i32_0 = arith.constant 0 : i32
    %c0_i32_1 = arith.constant 0 : i32
    return %c0_i32, %c0_i32_0 : i32, i32
  }
  func.func @transform_2(%arg0: i32, %arg1: i32) -> (i32, i32) {
    %c0_i32 = arith.constant 0 : i32
    %c0_i32_0 = arith.constant 0 : i32
    %c0_i32_1 = arith.constant 0 : i32
    return %c0_i32, %c0_i32_0 : i32, i32
  }
  func.func @transform_3(%arg0: i32, %arg1: i32) -> (i32, i32) {
    %c0_i32 = arith.constant 0 : i32
    %c0_i32_0 = arith.constant 0 : i32
    %c0_i32_1 = arith.constant 0 : i32
    return %c0_i32, %c0_i32_0 : i32, i32
  }
  func.func @transform_4(%arg0: i32, %arg1: i32) -> (i32, i32) {
    %c0_i32 = arith.constant 0 : i32
    %c0_i32_0 = arith.constant 0 : i32
    %c0_i32_1 = arith.constant 0 : i32
    return %c0_i32, %c0_i32_0 : i32, i32
  }
  func.func @transform_5(%arg0: i32, %arg1: i32) -> (i32, i32, i32) {
    %c0_i32 = arith.constant 0 : i32
    %c0_i32_0 = arith.constant 0 : i32
    %c0_i32_1 = arith.constant 0 : i32
    return %arg0, %c0_i32, %c0_i32_0 : i32, i32, i32
  }
}

</mosaic_0001>

<llo_original>
// kernel: tpu_custom_call.1
$region0: #{tpu_custom_call.1}
  #allocation0 [shape = 'u32[]', space=smem, size = 0x4, offset = 0x4, fixed_abs, tag = 'smem constant byte address 0x4 - core index']
  #allocation1 [shape = 'u32[144,128]{1,0:T(1,128)}', space=vmem, size = 0x12000, scoped, tag = 'internal scratch']
  #allocation2 [shape = 'f32[32,256]{1,0:T(8,128)}', space=vmem, size = 0x8000, scoped, tag = 'scratch operand']
  %s0 = inlined_call_operand.vmem [shape: bf16[2,4,256], index: 0, kind: input, shape index: {}]
  %s1 = inlined_call_operand.vmem [shape: f32[32,4], index: 1, kind: input, shape index: {}]
  %s2 = inlined_call_operand.vmem [shape: f32[32,1], index: 2, kind: input, shape index: {}]
  %s3 = inlined_call_operand.vmem [shape: f32[32,8], index: 3, kind: input, shape index: {}]
  %s4 = inlined_call_operand.vmem [shape: f32[1,8], index: 4, kind: input, shape index: {}]
  %s5 = inlined_call_operand.hbm [shape: f32[2,1,8], index: 5, kind: output, shape index: {}]
  %s6 = sld [smem:[#allocation0]]
  $region61: #{tpu_custom_call.1} parent=0
    _
  %s8 = ssub.s32 1, %s6
  %s9 = scalar_select 0, %s8, %s6
  $region1: #{tpu_custom_call.1} parent=0
    #allocation3 [shape = 'u8[1024]{0}', space=vmem, size = 0x400, scoped, tag = 'output window, operand 0']
    #allocation4 [shape = 's32[2]{0}', space=sflag, size = 0x8, scoped, tag = 'scoped memory for tpu_custom_call.1']
    %10 = vsyncpa [#allocation4], 0
    %s11 = scalar_lea.sflag [#allocation4], 1
    %12 = vsyncpa %s11, 0
    loop: start=0, step=1, limit=4
    $region2: #{tpu_custom_call.1} parent=1 // loop_pre_header
      _
    $region3: #{tpu_custom_call.1} parent=1 // loop_header
      %s14 = sphi 0, %s18
      %p15 = scmp.ge.s32.totalorder %s14, 4
      %s21 = sphi 0, %s33
      %s22 = sphi 0, %s29
      %s23 = sphi 0, %s21
      %s24 = sphi 0, %s22
      %s25 = sphi 0, %s23
      %s26 = sphi 0, %s24
      %s38 = sphi 0, %s40
      %s41 = sphi 0, %s38
      %s42 = sphi 0, %s41
      %s58 = sphi 0, %s42
      %s62 = sphi 0, %s62
      %s64 = sphi 0, %s62
      %s65 = sphi 0, %s64
      %s79 = sphi 0, %s65
      %s83 = sphi 0, %s83
      %s85 = sphi 0, %s83
      %s86 = sphi 0, %s85
      %s100 = sphi 0, %s86
      %s104 = sphi 0, %s104
      %s106 = sphi 0, %s104
      %s107 = sphi 0, %s106
      %s121 = sphi 0, %s107
      %s125 = sphi 0, %s125
      %s127 = sphi 0, %s125
      %s128 = sphi 0, %s127
      %s142 = sphi 0, %s128
      %s148 = sphi 0, %s150
      %s151 = sphi 0, %s148
      %s152 = sphi 0, %s151
      %s168 = sphi 0, %s152
    $region4: #{tpu_custom_call.1} parent=1 // loop_header_branch
      %17 = sbr.rel (%p15) target = $region8
    $region5: #{tpu_custom_call.1} parent=1 // loop_body
      %s19 = ssub.s32 %s14, 1
      %s20 = ssub.s32 %s14, 2
      %s27 = sadd.s32 1, %s22
      %p28 = scmp.ge.s32.totalorder %s27, 1
      %s29 = scalar_select %p28, 0, %s27
      %s30 = sadd.s32 1, %s21
      %s31 = scalar_select %p28, %s30, %s21
      %p32 = scmp.ge.s32.totalorder %s31, 2
      %s33 = scalar_select %p32, 0, %s31
      %s34 = ssub.s32 %s21, %s33
      %s35 = ssub.s32 %s22, %s29
      %s36 = sor.u32 %s34, %s35
      %p37 = scmp.eq.s32.totalorder %s36, 0
      %s39 = sadd.s32 %s38, 1
      %s40 = scalar_select %p37, %s38, %s39
      %p43 = pneg %p37
      %p44 = scmp.eq.s32.totalorder %s14, 1
      %p45 = por %p43, %p44
      %p46 = scmp.ne.s32.totalorder %s38, %s41
      %p47 = scmp.eq.s32.totalorder %s14, 0
      %p48 = por %p46, %p47
      %p49 = scmp.ne.s32.totalorder %s38, %s41
      %p50 = scmp.eq.s32.totalorder %s19, 1
      %p51 = por %p49, %p50
      %p52 = scmp.ne.s32.totalorder %s41, %s42
      %p53 = scmp.eq.s32.totalorder %s19, 0
      %p54 = por %p52, %p53
      %p55 = scmp.ne.s32.totalorder %s41, %s42
      %p56 = scmp.eq.s32.totalorder %s20, 1
      %p57 = por %p55, %p56
      %p59 = scmp.ne.s32.totalorder %s42, %s58
      %p60 = scmp.eq.s32.totalorder %s20, 0
      %p61 = por %p59, %p60
      %s63 = sadd.s32 %s62, 1
      %p66 = scmp.eq.s32.totalorder %s14, 1
      %p67 = scmp.ne.s32.totalorder %s62, %s64
      %p68 = scmp.eq.s32.totalorder %s14, 0
      %p69 = por %p67, %p68
      %p70 = scmp.ne.s32.totalorder %s62, %s64
      %p71 = scmp.eq.s32.totalorder %s19, 1
      %p72 = por %p70, %p71
      %p73 = scmp.ne.s32.totalorder %s64, %s65
      %p74 = scmp.eq.s32.totalorder %s19, 0
      %p75 = por %p73, %p74
      %p76 = scmp.ne.s32.totalorder %s64, %s65
      %p77 = scmp.eq.s32.totalorder %s20, 1
      %p78 = por %p76, %p77
      %p80 = scmp.ne.s32.totalorder %s65, %s79
      %p81 = scmp.eq.s32.totalorder %s20, 0
      %p82 = por %p80, %p81
      %s84 = sadd.s32 %s83, 1
      %p87 = scmp.eq.s32.totalorder %s14, 1
      %p88 = scmp.ne.s32.totalorder %s83, %s85
      %p89 = scmp.eq.s32.totalorder %s14, 0
      %p90 = por %p88, %p89
      %p91 = scmp.ne.s32.totalorder %s83, %s85
      %p92 = scmp.eq.s32.totalorder %s19, 1
      %p93 = por %p91, %p92
      %p94 = scmp.ne.s32.totalorder %s85, %s86
      %p95 = scmp.eq.s32.totalorder %s19, 0
      %p96 = por %p94, %p95
      %p97 = scmp.ne.s32.totalorder %s85, %s86
      %p98 = scmp.eq.s32.totalorder %s20, 1
      %p99 = por %p97, %p98
      %p101 = scmp.ne.s32.totalorder %s86, %s100
      %p102 = scmp.eq.s32.totalorder %s20, 0
      %p103 = por %p101, %p102
      %s105 = sadd.s32 %s104, 1
      %p108 = scmp.eq.s32.totalorder %s14, 1
      %p109 = scmp.ne.s32.totalorder %s104, %s106
      %p110 = scmp.eq.s32.totalorder %s14, 0
      %p111 = por %p109, %p110
      %p112 = scmp.ne.s32.totalorder %s104, %s106
      %p113 = scmp.eq.s32.totalorder %s19, 1
      %p114 = por %p112, %p113
      %p115 = scmp.ne.s32.totalorder %s106, %s107
      %p116 = scmp.eq.s32.totalorder %s19, 0
      %p117 = por %p115, %p116
      %p118 = scmp.ne.s32.totalorder %s106, %s107
      %p119 = scmp.eq.s32.totalorder %s20, 1
      %p120 = por %p118, %p119
      %p122 = scmp.ne.s32.totalorder %s107, %s121
      %p123 = scmp.eq.s32.totalorder %s20, 0
      %p124 = por %p122, %p123
      %s126 = sadd.s32 %s125, 1
      %p129 = scmp.eq.s32.totalorder %s14, 1
      %p130 = scmp.ne.s32.totalorder %s125, %s127
      %p131 = scmp.eq.s32.totalorder %s14, 0
      %p132 = por %p130, %p131
      %p133 = scmp.ne.s32.totalorder %s125, %s127
      %p134 = scmp.eq.s32.totalorder %s19, 1
      %p135 = por %p133, %p134
      %p136 = scmp.ne.s32.totalorder %s127, %s128
      %p137 = scmp.eq.s32.totalorder %s19, 0
      %p138 = por %p136, %p137
      %p139 = scmp.ne.s32.totalorder %s127, %s128
      %p140 = scmp.eq.s32.totalorder %s20, 1
      %p141 = por %p139, %p140
      %p143 = scmp.ne.s32.totalorder %s128, %s142
      %p144 = scmp.eq.s32.totalorder %s20, 0
      %p145 = por %p143, %p144
      %s146 = ssub.s32 %s21, %s33
      %p147 = scmp.eq.s32.totalorder %s146, 0
      %s149 = sadd.s32 %s148, 1
      %s150 = scalar_select %p147, %s148, %s149
      %p153 = pneg %p147
      %p154 = scmp.eq.s32.totalorder %s14, 1
      %p155 = por %p153, %p154
      %p156 = scmp.ne.s32.totalorder %s148, %s151
      %p157 = scmp.eq.s32.totalorder %s14, 0
      %p158 = por %p156, %p157
      %p159 = scmp.ne.s32.totalorder %s148, %s151
      %p160 = scmp.eq.s32.totalorder %s19, 1
      %p161 = por %p159, %p160
      %p162 = scmp.ne.s32.totalorder %s151, %s152
      %p163 = scmp.eq.s32.totalorder %s19, 0
      %p164 = por %p162, %p163
      %p165 = scmp.ne.s32.totalorder %s151, %s152
      %p166 = scmp.eq.s32.totalorder %s20, 1
      %p167 = por %p165, %p166
      %p169 = scmp.ne.s32.totalorder %s152, %s168
      %p170 = scmp.eq.s32.totalorder %s20, 0
      %p171 = por %p169, %p170
      %p172 = scmp.le.s32.totalorder 1, %s14
      %p173 = scmp.lt.s32.totalorder %s14, 3
      %p174 = pnand %p172, %p173
      %p175 = pneg %p174
      // Predicated region
      $region9: #{tpu_custom_call.1} parent=5 // pred_check
        _
      $region10: #{tpu_custom_call.1} parent=5 // pred_check_branch
        %177 = sbr.rel (%p174) target = $region12
      $region11: #{tpu_custom_call.1} parent=5 // pred_region
        %s178 = ssub.s32 %s14, 1
        // Predicated region
        $region13: #{tpu_custom_call.1} parent=11 // pred_check
          %p179 = pneg %p75
        $region14: #{tpu_custom_call.1} parent=11 // pred_check_branch
          %181 = sbr.rel (%p179) target = $region16
        $region15: #{tpu_custom_call.1} parent=11 // pred_region
          _
        $region16: #{tpu_custom_call.1} parent=11 // pred_fallthru
          _
        // Predicated region
        $region17: #{tpu_custom_call.1} parent=11 // pred_check
          %p182 = pneg %p96
        $region18: #{tpu_custom_call.1} parent=11 // pred_check_branch
          %184 = sbr.rel (%p182) target = $region20
        $region19: #{tpu_custom_call.1} parent=11 // pred_region
          _
        $region20: #{tpu_custom_call.1} parent=11 // pred_fallthru
          _
        // Predicated region
        $region21: #{tpu_custom_call.1} parent=11 // pred_check
          %p185 = pneg %p117
        $region22: #{tpu_custom_call.1} parent=11 // pred_check_branch
          %187 = sbr.rel (%p185) target = $region24
        $region23: #{tpu_custom_call.1} parent=11 // pred_region
          _
        $region24: #{tpu_custom_call.1} parent=11 // pred_fallthru
          _
        // Predicated region
        $region25: #{tpu_custom_call.1} parent=11 // pred_check
          %p188 = pneg %p138
        $region26: #{tpu_custom_call.1} parent=11 // pred_check_branch
          %190 = sbr.rel (%p188) target = $region28
        $region27: #{tpu_custom_call.1} parent=11 // pred_region
          _
        $region28: #{tpu_custom_call.1} parent=11 // pred_fallthru
          _
      $region12: #{tpu_custom_call.1} parent=5 // pred_fallthru
        _
      %p191 = scmp.lt.s32.totalorder %s14, 2
      // Predicated region
      $region29: #{tpu_custom_call.1} parent=5 // pred_check
        %p192 = pneg %p191
      $region30: #{tpu_custom_call.1} parent=5 // pred_check_branch
        %194 = sbr.rel (%p192) target = $region32
      $region31: #{tpu_custom_call.1} parent=5 // pred_region
        // Predicated region
        $region33: #{tpu_custom_call.1} parent=31 // pred_check
          %p195 = pneg %p48
        $region34: #{tpu_custom_call.1} parent=31 // pred_check_branch
          %197 = sbr.rel (%p195) target = $region36
        $region35: #{tpu_custom_call.1} parent=31 // pred_region
          %s198 = smul.u32 2, %s22
          %p199 = scmp.lt.s32.totalorder %s21, 1
          %s200 = scalar_select %p199, %s21, 1
          %p201 = scmp.lt.s32.totalorder %s198, 1
          %s202 = scalar_select %p201, %s198, 1
          %s203 = smul.addr %s200, 2
          %s204 = sadd.s32 %s202, %s203
          %s205 = smul.addr %s204, 2
          %s206 = scalar_lea.vmem %s0, %s205
          %s207 = smul.u32 2, %s22
        $region36: #{tpu_custom_call.1} parent=31 // pred_fallthru
          _
      $region32: #{tpu_custom_call.1} parent=5 // pred_fallthru
        _
      %p208 = scmp.le.s32.totalorder 1, %s14
      %p209 = scmp.lt.s32.totalorder %s14, 3
      %p210 = pnand %p208, %p209
      %p211 = pneg %p210
      // Predicated region
      $region37: #{tpu_custom_call.1} parent=5 // pred_check
        _
      $region38: #{tpu_custom_call.1} parent=5 // pred_check_branch
        %213 = sbr.rel (%p210) target = $region40
      $region39: #{tpu_custom_call.1} parent=5 // pred_region
        %s214 = ssub.s32 %s14, 1
        %s215 = smul.u32 2, %s24
        %p216 = scmp.lt.s32.totalorder %s23, 1
        %s217 = scalar_select %p216, %s23, 1
        %p218 = scmp.lt.s32.totalorder %s215, 1
        %s219 = scalar_select %p218, %s215, 1
        %s220 = smul.addr %s217, 2
        %s221 = sadd.s32 %s219, %s220
        %s222 = smul.addr %s221, 2
        %s223 = scalar_lea.vmem %s0, %s222
        %p224 = pneg %p54
        %p225 = pneg %p51
        %p226 = pneg %p75
        %p227 = pneg %p72
        %p228 = pneg %p96
        %p229 = pneg %p93
        %p230 = pneg %p117
        %p231 = pneg %p114
        %p232 = pneg %p138
        %p233 = pneg %p135
        %p234 = pneg %p164
        %p235 = pneg %p161
        %s236 = sand.u32 %s151, 1
        %s237 = scalar_lea.sflag [#allocation4], %s236
        %s238 = sand.u32 %s151, 1
        %s239 = scalar_lea.vmem [#allocation3], %s238
        %s240 = smul.u32 2, %s24
        %p241 = scmp.lt.s32.totalorder %s23, 1
        %s242 = scalar_select %p241, %s23, 1
        %p243 = scmp.lt.s32.totalorder %s240, 1
        %s244 = scalar_select %p243, %s240, 1
        %s245 = smul.addr %s242, 2
        %s246 = sadd.s32 %s244, %s245
        %s247 = smul.addr %s246, 2
        %s248 = scalar_lea.vmem %s0, %s247
        %s249 = smul.u32 2, %s24
        %p250 = scmp.eq.s32.totalorder %s24, 0
        // Predicated region
        $region41: #{tpu_custom_call.1} parent=39 // pred_check
          %p251 = pneg %p250
        $region42: #{tpu_custom_call.1} parent=39 // pred_check_branch
          %253 = sbr.rel (%p251) target = $region44
        $region43: #{tpu_custom_call.1} parent=39 // pred_region
          %254 = vst [vmem:[#allocation2] sm:$0xff] 0.0
          %255 = vst [vmem:[#allocation2 + $0x8] sm:$0xff] 0.0
          %256 = vst [vmem:[#allocation2 + $0x10] sm:$0xff] 0.0
          %257 = vst [vmem:[#allocation2 + $0x18] sm:$0xff] 0.0
          %258 = vst [vmem:[#allocation2 + $0x20] sm:$0xff] 0.0
          %259 = vst [vmem:[#allocation2 + $0x28] sm:$0xff] 0.0
          %260 = vst [vmem:[#allocation2 + $0x30] sm:$0xff] 0.0
          %261 = vst [vmem:[#allocation2 + $0x38] sm:$0xff] 0.0
        $region44: #{tpu_custom_call.1} parent=39 // pred_fallthru
          _
        %v262 = vld [vmem:[%s248] sm:$0xf]
        %v263 = vunpack.c.l.bf16 %v262
        %v264 = vld [vmem:[%s1] sm:$0xff]
        %v265 = vld [vmem:[%s1 + $0x8] sm:$0xff]
        %v266 = vld [vmem:[%s1 + $0x10] sm:$0xff]
        %v267 = vld [vmem:[%s1 + $0x18] sm:$0xff]
        %269 = vset.pattern.permute.xlu0 0
        %270 = vperm.xlu0 %269, %v264
        %v271 = vpop.permute.xlu0 %270
        %274 = vset.pattern.permute.xlu0 0
        %275 = vperm.xlu0 %274, %v265
        %v276 = vpop.permute.xlu0 %275
        %279 = vset.pattern.permute.xlu0 0
        %280 = vperm.xlu0 %279, %v266
        %v281 = vpop.permute.xlu0 %280
        %284 = vset.pattern.permute.xlu0 0
        %285 = vperm.xlu0 %284, %v267
        %v286 = vpop.permute.xlu0 %285
        %v289 = vlaneseq
        %v290 = vshrl.u32 %v289, 7
        %v291 = vsub.s32 0, %v290
        %v292 = vrot.slane %v263, %v291
        %v293 = vlaneseq
        %v294 = vshrl.u32 %v293, 7
        %v295 = vsub.s32 4, %v294
        %v296 = vrot.slane %v263, %v295
        %v299 = vlaneseq
        %v300 = vshrl.u32 %v299, 7
        %v301 = vsub.s32 0, %v300
        %v302 = vrot.slane %v292, %v301
        %v303 = vlaneseq
        %v304 = vshrl.u32 %v303, 7
        %v305 = vsub.s32 0, %v304
        %v306 = vrot.slane %v296, %v305
        %v307 = vmul.f32 %v271, %v302
        %v308 = vmul.f32 %v271, %v306
        %v309 = vmul.f32 %v276, %v302
        %v310 = vmul.f32 %v276, %v306
        %v311 = vmul.f32 %v281, %v302
        %v312 = vmul.f32 %v281, %v306
        %v313 = vmul.f32 %v286, %v302
        %v314 = vmul.f32 %v286, %v306
        %315 = vset.pattern.permute.xlu0 1
        %316 = vperm.xlu0 %315, %v264
        %v317 = vpop.permute.xlu0 %316
        %319 = vset.pattern.permute.xlu0 1
        %320 = vperm.xlu0 %319, %v265
        %v321 = vpop.permute.xlu0 %320
        %323 = vset.pattern.permute.xlu0 1
        %324 = vperm.xlu0 %323, %v266
        %v325 = vpop.permute.xlu0 %324
        %327 = vset.pattern.permute.xlu0 1
        %328 = vperm.xlu0 %327, %v267
        %v329 = vpop.permute.xlu0 %328
        %v331 = vlaneseq
        %v332 = vshrl.u32 %v331, 7
        %v333 = vsub.s32 1, %v332
        %v334 = vrot.slane %v263, %v333
        %v335 = vlaneseq
        %v336 = vshrl.u32 %v335, 7
        %v337 = vsub.s32 5, %v336
        %v338 = vrot.slane %v263, %v337
        %v341 = vlaneseq
        %v342 = vshrl.u32 %v341, 7
        %v343 = vsub.s32 1, %v342
        %v344 = vrot.slane %v334, %v343
        %v345 = vlaneseq
        %v346 = vshrl.u32 %v345, 7
        %v347 = vsub.s32 1, %v346
        %v348 = vrot.slane %v338, %v347
        %v349 = vmul.f32 %v317, %v344
        %v350 = vmul.f32 %v317, %v348
        %v351 = vmul.f32 %v321, %v344
        %v352 = vmul.f32 %v321, %v348
        %v353 = vmul.f32 %v325, %v344
        %v354 = vmul.f32 %v325, %v348
        %v355 = vmul.f32 %v329, %v344
        %v356 = vmul.f32 %v329, %v348
        %v357 = vadd.f32 %v307, %v349
        %v358 = vadd.f32 %v308, %v350
        %v359 = vadd.f32 %v309, %v351
        %v360 = vadd.f32 %v310, %v352
        %v361 = vadd.f32 %v311, %v353
        %v362 = vadd.f32 %v312, %v354
        %v363 = vadd.f32 %v313, %v355
        %v364 = vadd.f32 %v314, %v356
        %365 = vset.pattern.permute.xlu0 2
        %366 = vperm.xlu0 %365, %v264
        %v367 = vpop.permute.xlu0 %366
        %369 = vset.pattern.permute.xlu0 2
        %370 = vperm.xlu0 %369, %v265
        %v371 = vpop.permute.xlu0 %370
        %373 = vset.pattern.permute.xlu0 2
        %374 = vperm.xlu0 %373, %v266
        %v375 = vpop.permute.xlu0 %374
        %377 = vset.pattern.permute.xlu0 2
        %378 = vperm.xlu0 %377, %v267
        %v379 = vpop.permute.xlu0 %378
        %v381 = vlaneseq
        %v382 = vshrl.u32 %v381, 7
        %v383 = vsub.s32 2, %v382
        %v384 = vrot.slane %v263, %v383
        %v385 = vlaneseq
        %v386 = vshrl.u32 %v385, 7
        %v387 = vsub.s32 6, %v386
        %v388 = vrot.slane %v263, %v387
        %v391 = vlaneseq
        %v392 = vshrl.u32 %v391, 7
        %v393 = vsub.s32 2, %v392
        %v394 = vrot.slane %v384, %v393
        %v395 = vlaneseq
        %v396 = vshrl.u32 %v395, 7
        %v397 = vsub.s32 2, %v396
        %v398 = vrot.slane %v388, %v397
        %v399 = vmul.f32 %v367, %v394
        %v400 = vmul.f32 %v367, %v398
        %v401 = vmul.f32 %v371, %v394
        %v402 = vmul.f32 %v371, %v398
        %v403 = vmul.f32 %v375, %v394
        %v404 = vmul.f32 %v375, %v398
        %v405 = vmul.f32 %v379, %v394
        %v406 = vmul.f32 %v379, %v398
        %v407 = vadd.f32 %v357, %v399
        %v408 = vadd.f32 %v358, %v400
        %v409 = vadd.f32 %v359, %v401
        %v410 = vadd.f32 %v360, %v402
        %v411 = vadd.f32 %v361, %v403
        %v412 = vadd.f32 %v362, %v404
        %v413 = vadd.f32 %v363, %v405
        %v414 = vadd.f32 %v364, %v406
        %415 = vset.pattern.permute.xlu0 3
        %416 = vperm.xlu0 %415, %v264
        %v417 = vpop.permute.xlu0 %416
        %419 = vset.pattern.permute.xlu0 3
        %420 = vperm.xlu0 %419, %v265
        %v421 = vpop.permute.xlu0 %420
        %423 = vset.pattern.permute.xlu0 3
        %424 = vperm.xlu0 %423, %v266
        %v425 = vpop.permute.xlu0 %424
        %427 = vset.pattern.permute.xlu0 3
        %428 = vperm.xlu0 %427, %v267
        %v429 = vpop.permute.xlu0 %428
        %v431 = vlaneseq
        %v432 = vshrl.u32 %v431, 7
        %v433 = vsub.s32 3, %v432
        %v434 = vrot.slane %v263, %v433
        %v435 = vlaneseq
        %v436 = vshrl.u32 %v435, 7
        %v437 = vsub.s32 7, %v436
        %v438 = vrot.slane %v263, %v437
        %v441 = vlaneseq
        %v442 = vshrl.u32 %v441, 7
        %v443 = vsub.s32 3, %v442
        %v444 = vrot.slane %v434, %v443
        %v445 = vlaneseq
        %v446 = vshrl.u32 %v445, 7
        %v447 = vsub.s32 3, %v446
        %v448 = vrot.slane %v438, %v447
        %v449 = vmul.f32 %v417, %v444
        %v450 = vmul.f32 %v417, %v448
        %v451 = vmul.f32 %v421, %v444
        %v452 = vmul.f32 %v421, %v448
        %v453 = vmul.f32 %v425, %v444
        %v454 = vmul.f32 %v425, %v448
        %v455 = vmul.f32 %v429, %v444
        %v456 = vmul.f32 %v429, %v448
        %v457 = vadd.f32 %v407, %v449
        %v458 = vadd.f32 %v408, %v450
        %v459 = vadd.f32 %v409, %v451
        %v460 = vadd.f32 %v410, %v452
        %v461 = vadd.f32 %v411, %v453
        %v462 = vadd.f32 %v412, %v454
        %v463 = vadd.f32 %v413, %v455
        %v464 = vadd.f32 %v414, %v456
        %v465 = vld [vmem:[%s2] sm:$0xff]
        %v466 = vld [vmem:[%s2 + $0x8] sm:$0xff]
        %v467 = vld [vmem:[%s2 + $0x10] sm:$0xff]
        %v468 = vld [vmem:[%s2 + $0x18] sm:$0xff]
        %470 = vset.pattern.permute.xlu0 0
        %471 = vperm.xlu0 %470, %v465
        %v472 = vpop.permute.xlu0 %471
        %475 = vset.pattern.permute.xlu0 0
        %476 = vperm.xlu0 %475, %v466
        %v477 = vpop.permute.xlu0 %476
        %480 = vset.pattern.permute.xlu0 0
        %481 = vperm.xlu0 %480, %v467
        %v482 = vpop.permute.xlu0 %481
        %485 = vset.pattern.permute.xlu0 0
        %486 = vperm.xlu0 %485, %v468
        %v487 = vpop.permute.xlu0 %486
        %v489 = vadd.f32 %v457, %v472
        %v490 = vadd.f32 %v458, %v472
        %v491 = vadd.f32 %v459, %v477
        %v492 = vadd.f32 %v460, %v477
        %v493 = vadd.f32 %v461, %v482
        %v494 = vadd.f32 %v462, %v482
        %v495 = vadd.f32 %v463, %v487
        %v496 = vadd.f32 %v464, %v487
        %v497 = vmax.f32 %v489, 0.0
        %v498 = vmax.f32 %v490, 0.0
        %v499 = vmax.f32 %v491, 0.0
        %v500 = vmax.f32 %v492, 0.0
        %v501 = vmax.f32 %v493, 0.0
        %v502 = vmax.f32 %v494, 0.0
        %v503 = vmax.f32 %v495, 0.0
        %v504 = vmax.f32 %v496, 0.0
        %v505 = vld [vmem:[#allocation2] sm:$0xff]
        %v506 = vld [vmem:[#allocation2 + $0x8] sm:$0xff]
        %v507 = vld [vmem:[#allocation2 + $0x10] sm:$0xff]
        %v508 = vld [vmem:[#allocation2 + $0x18] sm:$0xff]
        %v509 = vld [vmem:[#allocation2 + $0x20] sm:$0xff]
        %v510 = vld [vmem:[#allocation2 + $0x28] sm:$0xff]
        %v511 = vld [vmem:[#allocation2 + $0x30] sm:$0xff]
        %v512 = vld [vmem:[#allocation2 + $0x38] sm:$0xff]
        %v513 = vadd.f32 %v505, %v497
        %v514 = vadd.f32 %v506, %v498
        %v515 = vadd.f32 %v507, %v499
        %v516 = vadd.f32 %v508, %v500
        %v517 = vadd.f32 %v509, %v501
        %v518 = vadd.f32 %v510, %v502
        %v519 = vadd.f32 %v511, %v503
        %v520 = vadd.f32 %v512, %v504
        %521 = vst [vmem:[#allocation2] sm:$0xff] %v513
        %522 = vst [vmem:[#allocation2 + $0x8] sm:$0xff] %v514
        %523 = vst [vmem:[#allocation2 + $0x10] sm:$0xff] %v515
        %524 = vst [vmem:[#allocation2 + $0x18] sm:$0xff] %v516
        %525 = vst [vmem:[#allocation2 + $0x20] sm:$0xff] %v517
        %526 = vst [vmem:[#allocation2 + $0x28] sm:$0xff] %v518
        %527 = vst [vmem:[#allocation2 + $0x30] sm:$0xff] %v519
        %528 = vst [vmem:[#allocation2 + $0x38] sm:$0xff] %v520
        // Predicated region
        $region45: #{tpu_custom_call.1} parent=39 // pred_check
          %p529 = pneg %p250
        $region46: #{tpu_custom_call.1} parent=39 // pred_check_branch
          %531 = sbr.rel (%p529) target = $region48
        $region47: #{tpu_custom_call.1} parent=39 // pred_region
          %v532 = vld [vmem:[#allocation2] sm:$0xff]
          %v533 = vld [vmem:[#allocation2 + $0x8] sm:$0xff]
          %v534 = vld [vmem:[#allocation2 + $0x10] sm:$0xff]
          %v535 = vld [vmem:[#allocation2 + $0x18] sm:$0xff]
          %v536 = vld [vmem:[#allocation2 + $0x20] sm:$0xff]
          %v537 = vld [vmem:[#allocation2 + $0x28] sm:$0xff]
          %v538 = vld [vmem:[#allocation2 + $0x30] sm:$0xff]
          %v539 = vld [vmem:[#allocation2 + $0x38] sm:$0xff]
          %v540 = vadd.f32 %v532, %v533
          %541 = vadd.xlane.f32.xlu0 %v540
          %v542 = vpop.xlane.xlu0 %541
          %v543 = vadd.f32 %v534, %v535
          %544 = vadd.xlane.f32.xlu0 %v543
          %v545 = vpop.xlane.xlu0 %544
          %v546 = vadd.f32 %v536, %v537
          %547 = vadd.xlane.f32.xlu0 %v546
          %v548 = vpop.xlane.xlu0 %547
          %v549 = vadd.f32 %v538, %v539
          %550 = vadd.xlane.f32.xlu0 %v549
          %v551 = vpop.xlane.xlu0 %550
          %v552 = vmul.f32 %v542, 0.00390625
          %v553 = vmul.f32 %v545, 0.00390625
          %v554 = vmul.f32 %v548, 0.00390625
          %v555 = vmul.f32 %v551, 0.00390625
          %v556 = vld [vmem:[%s3] sm:$0xff]
          %v557 = vld [vmem:[%s3 + $0x8] sm:$0xff]
          %v558 = vld [vmem:[%s3 + $0x10] sm:$0xff]
          %v559 = vld [vmem:[%s3 + $0x18] sm:$0xff]
          %v560 = vmul.f32 %v556, %v552
          %v561 = vmul.f32 %v557, %v553
          %v562 = vmul.f32 %v558, %v554
          %v563 = vmul.f32 %v559, %v555
          %vm564 = vcmask 64512
          %v565 = vsel %vm564, %v560, 0.0
          %v566 = vsel %vm564, %v561, 0.0
          %v567 = vadd.f32 %v565, %v566
          %v568 = vsel %vm564, %v562, 0.0
          %v569 = vadd.f32 %v567, %v568
          %v570 = vsel %vm564, %v563, 0.0
          %v571 = vadd.f32 %v569, %v570
          %v572 = vrot.slane %v571, 4
          %v573 = vadd.f32 %v571, %v572
          %v574 = vrot.slane %v573, 2
          %v575 = vadd.f32 %v573, %v574
          %v576 = vrot.slane %v575, 1
          %v577 = vadd.f32 %v575, %v576
          %v578 = vld [vmem:[%s4] sm:$0x1]
          %v579 = vadd.f32 %v577, %v578
          %vm580 = vcmask 57344
          %581 = vst.msk [vmem:[%s239] sm:$0x1] %vm580, %v579
        $region48: #{tpu_custom_call.1} parent=39 // pred_fallthru
          _
        %s582 = sand.u32 %s151, 1
        %s583 = scalar_lea.sflag [#allocation4], %s582
        %s584 = sand.u32 %s151, 1
        %s585 = scalar_lea.vmem [#allocation3], %s584
        // Predicated region
        $region49: #{tpu_custom_call.1} parent=39 // pred_check
          %p586 = pneg %p161
        $region50: #{tpu_custom_call.1} parent=39 // pred_check_branch
          %588 = sbr.rel (%p586) target = $region52
        $region51: #{tpu_custom_call.1} parent=39 // pred_region
          %s590 = ssub.s32 16, 16
          %591 = vsyncadd %s583, %s590
          %s592 = smul.addr %s23, 16
          %s593 = scalar_lea.hbm %s5, %s592
          %s595 = sshll.u32 %s585, 4
          %s596 = int_to_ptr.vmem [resolvable:$true] %s595
          %598 = dma.vmem_to_hbm [thread:$0]  %s596, 16, %s593, %s583
        $region52: #{tpu_custom_call.1} parent=39 // pred_fallthru
          _
      $region40: #{tpu_custom_call.1} parent=5 // pred_fallthru
        _
      %p599 = scmp.le.s32.totalorder 2, %s14
      // Predicated region
      $region53: #{tpu_custom_call.1} parent=5 // pred_check
        %p600 = pneg %p599
      $region54: #{tpu_custom_call.1} parent=5 // pred_check_branch
        %602 = sbr.rel (%p600) target = $region56
      $region55: #{tpu_custom_call.1} parent=5 // pred_region
        %s603 = ssub.s32 %s14, 2
        // Predicated region
        $region57: #{tpu_custom_call.1} parent=55 // pred_check
          %p604 = pneg %p167
        $region58: #{tpu_custom_call.1} parent=55 // pred_check_branch
          %606 = sbr.rel (%p604) target = $region60
        $region59: #{tpu_custom_call.1} parent=55 // pred_region
          %s607 = sand.u32 %s152, 1
          %s608 = scalar_lea.sflag [#allocation4], %s607
          %s609 = sand.u32 %s152, 1
          %s610 = scalar_lea.vmem [#allocation3], %s609
          %611 = dma.done %s608, 16
        $region60: #{tpu_custom_call.1} parent=55 // pred_fallthru
          _
      $region56: #{tpu_custom_call.1} parent=5 // pred_fallthru
        _
    $region6: #{tpu_custom_call.1} parent=1 // loop_footer
      %s18 = sadd.s32 1, %s14
    $region7: #{tpu_custom_call.1} parent=1 // loop_footer_branch
      %13 = sbr.rel target = $region3
    $region8: #{tpu_custom_call.1} parent=1 // loop_exit
      _
    %612 = vsyncpa [#allocation4], 1
    %s613 = scalar_lea.sflag [#allocation4], 1
    %614 = vsyncpa %s613, 1

</llo_original>
